<compile_context>
chip_gen: v7x
topology: tpu7x:2x2x1
jax: 0.10.0
libtpu: 0.0.40
codegen_flags: <defaults>
</compile_context>

<pallas_src>
import jax
import jax.numpy as jnp
from jax.experimental import pallas as pl
from jax.experimental.pallas import tpu as pltpu

EPS = 1e-5
NEG_SLOPE = 0.2


def d1d_kernel(x_ref, w_ref, gb_ref, o_ref):
    # x: (N, D) bf16 (resident across F-tiles); w: (D, Ft) bf16;
    # gb: (2, Ft) f32 (row 0 = gamma, row 1 = beta); out: (N, <=Ft) f32.
    x = x_ref[...]
    w = w_ref[...]

    # Linear on the MXU, bf16 inputs, f32 accumulate. Bias omitted: training-mode
    # BatchNorm subtracts the per-feature batch mean, which cancels a constant bias.
    y = jnp.dot(x, w, preferred_element_type=jnp.float32)  # (N, Ft) f32

    # One-pass batch statistics over the batch axis (single XLU reduction pass).
    inv_n = jnp.float32(1.0 / y.shape[0])
    s = jnp.sum(y, axis=0, keepdims=True)        # (1, Ft)
    ss = jnp.sum(y * y, axis=0, keepdims=True)   # (1, Ft)
    mean = s * inv_n
    var = jnp.maximum(ss * inv_n - mean * mean, 0.0)  # biased var, clamped >= 0

    # Fold BN affine into per-feature scale/shift on the small (1, Ft) vectors,
    # so the full-size (N, Ft) epilogue is just mul + add.
    gamma = gb_ref[0:1, :]
    beta = gb_ref[1:2, :]
    scale = gamma * jax.lax.rsqrt(var + EPS)     # (1, Ft)
    shift = beta - mean * scale                  # (1, Ft)

    z = y * scale + shift
    # LeakyReLU(0.2): max(z, 0.2*z) is exact for slope in (0, 1).
    o_ref[...] = jnp.maximum(z, NEG_SLOPE * z).astype(o_ref.dtype)


def pick_f_tile(f_out):
    # 256-lane tiles fill the 2x256^2 MXU on v6e/v7x; 128 suffices for narrow
    # layers and matches the v5e 4x128^2 MXU.
    return 256 if f_out > 128 else 128


def prepare_params(w, gamma, beta):
    """One-time persistent layout prep (do NOT redo per forward call):
      - weight transposed to (D, F), feature dim zero-padded to a lane-tile
        multiple, stored in bf16 (native MXU dtype);
      - gamma/beta packed into one (2, F_pad) f32 array (one DMA per tile)."""
    f_out, _ = w.shape
    f_tile = pick_f_tile(f_out)
    f_pad = ((f_out + f_tile - 1) // f_tile) * f_tile
    pad = f_pad - f_out
    w_df = jnp.pad(jnp.transpose(w), ((0, 0), (0, pad))).astype(jnp.bfloat16)
    gb = jnp.stack([jnp.pad(gamma, (0, pad)),
                    jnp.pad(beta, (0, pad))]).astype(jnp.float32)  # (2, F_pad)
    return w_df, gb, f_out, f_tile


def d1d_forward(x, w_df, gb, f_out, f_tile):
    """x: (N, D) float; w_df: (D, F_pad) bf16; gb: (2, F_pad) f32.
    Returns (N, f_out) f32."""
    n, d = x.shape
    f_pad = w_df.shape[1]
    assert f_pad % f_tile == 0
    grid = (f_pad // f_tile,)

    # bf16 at the boundary: halves x DMA bytes and feeds the MXU its native dtype.
    x_c = x.astype(w_df.dtype)

    cost = pl.CostEstimate(
        flops=2 * n * d * f_pad + 6 * n * f_pad,
        transcendentals=f_pad,  # rsqrt per feature
        bytes_accessed=2 * (n * d + d * f_pad) + 4 * (2 * f_pad + n * f_out),
    )

    return pl.pallas_call(
        d1d_kernel,
        out_shape=jax.ShapeDtypeStruct((n, f_out), jnp.float32),
        grid_spec=pltpu.PrefetchScalarGridSpec(
            num_scalar_prefetch=0,
            grid=grid,
            in_specs=[
                pl.BlockSpec((n, d), lambda j: (0, 0)),        # x resident across F-tiles
                pl.BlockSpec((d, f_tile), lambda j: (0, j)),   # weight F-tile
                pl.BlockSpec((2, f_tile), lambda j: (0, j)),   # packed gamma/beta tile
            ],
            # Output emitted directly at (n, f_out); the (possibly partial) last
            # tile is a masked store — cheaper than a separate slice launch.
            out_specs=pl.BlockSpec((n, f_tile), lambda j: (0, j)),
        ),
        compiler_params=pltpu.CompilerParams(
            dimension_semantics=("parallel",),  # per-feature stats -> F-tiles independent
        ),
        cost_estimate=cost,
    )(x_c, w_df, gb)


def reference(x, w, b, gamma, beta):
    # Faithful PyTorch semantics (Linear WITH bias + training-mode BatchNorm + LeakyReLU).
    y = x @ w.T + b
    mean = jnp.mean(y, axis=0, keepdims=True)
    var = jnp.mean((y - mean) ** 2, axis=0, keepdims=True)
    z = (y - mean) / jnp.sqrt(var + EPS) * gamma + beta
    return jnp.where(z >= 0, z, NEG_SLOPE * z)


if __name__ == "__main__":
    # Small shapes consistent with the module: batch=8, input_dims=32, filters=16
    N, D, F_out = 8, 32, 16

    key = jax.random.PRNGKey(0)
    kx, kw, kb = jax.random.split(key, 3)

    x = jax.random.normal(kx, (N, D), dtype=jnp.float32)

    # Deterministic parameter init (kaiming-uniform-like bounds, as torch Linear)
    bound = 1.0 / (D ** 0.5)
    w = jax.random.uniform(kw, (F_out, D), minval=-bound, maxval=bound,
                           dtype=jnp.float32)
    b = jax.random.uniform(kb, (F_out,), minval=-bound, maxval=bound,
                           dtype=jnp.float32)
    gamma = jnp.ones((F_out,), dtype=jnp.float32)   # torch BatchNorm1d default
    beta = jnp.zeros((F_out,), dtype=jnp.float32)

    # One-time persistent layout prep, then forward (single fused kernel).
    w_df, gb, f_out, f_tile = prepare_params(w, gamma, beta)
    out = d1d_forward(x, w_df, gb, f_out, f_tile)
    jax.block_until_ready(out)
    assert out.shape == (N, F_out)

    # Tight check against the same math on bf16-quantized inputs (what the MXU sees).
    xq = x.astype(jnp.bfloat16).astype(jnp.float32)
    wq = w_df[:, :F_out].astype(jnp.float32).T  # back to (F_out, D) f32
    ref_q = reference(xq, wq, b, gamma, beta)
    assert jnp.allclose(out, ref_q, atol=2e-4, rtol=2e-4), float(
        jnp.max(jnp.abs(out - ref_q)))

    # Loose check against the full-precision f32 reference (bf16 input rounding).
    ref_f32 = reference(x, w, b, gamma, beta)
    assert jnp.allclose(out, ref_f32, atol=5e-2, rtol=5e-2), float(
        jnp.max(jnp.abs(out - ref_f32)))

    print("KERNEL_OK")
</pallas_src>

<mosaic_0001>
module attributes {stable_mosaic.version = 11 : i64} {
  func.func @d1d_kernel(%arg0: i32, %arg1: memref<8x32xbf16, #tpu.memory_space<vmem>>, %arg2: memref<32x128xbf16, #tpu.memory_space<vmem>>, %arg3: memref<2x128xf32, #tpu.memory_space<vmem>>, %arg4: memref<8x128xf32, #tpu.memory_space<vmem>>) attributes {dimension_semantics = [#tpu.dimension_semantics<parallel>], iteration_bounds = array<i64: 1>, scalar_prefetch = 0 : i64, scratch_operands = 0 : i64, tpu.core_type = #tpu.core_type<tc>, window_params = [{pipeline_mode = #tpu.pipeline_mode<synchronous>, transform_indices = @transform_0, window_bounds = array<i64: 8, 32>}, {transform_indices = @transform_1, window_bounds = array<i64: 32, 128>}, {transform_indices = @transform_2, window_bounds = array<i64: 2, 128>}, {transform_indices = @transform_3, window_bounds = array<i64: 8, 128>}]} {
    %c0 = arith.constant 0 : index
    %c0_0 = arith.constant 0 : index
    %0 = vector.load %arg1[%c0, %c0_0] : memref<8x32xbf16, #tpu.memory_space<vmem>>, vector<8x32xbf16>
    %c0_1 = arith.constant 0 : index
    %c0_2 = arith.constant 0 : index
    %1 = vector.load %arg2[%c0_1, %c0_2] : memref<32x128xbf16, #tpu.memory_space<vmem>>, vector<32x128xbf16>
    %cst = arith.constant dense<0.000000e+00> : vector<8x128xf32>
    %2 = tpu.matmul %0, %1, %cst {dimension_numbers = #tpu.dot_dimension_numbers<[1], [0], [0], [1], [0, 0, 1, 1], [], []>} : vector<8x32xbf16>, vector<32x128xbf16>, vector<8x128xf32> -> vector<8x128xf32>
    %cst_3 = arith.constant dense<0.000000e+00> : vector<128xf32>
    %3 = vector.multi_reduction <add>, %2, %cst_3 [0] : vector<8x128xf32> to vector<128xf32>
    %4 = vector.shape_cast %3 : vector<128xf32> to vector<1x128xf32>
    %5 = arith.mulf %2, %2 : vector<8x128xf32>
    %cst_4 = arith.constant dense<0.000000e+00> : vector<128xf32>
    %6 = vector.multi_reduction <add>, %5, %cst_4 [0] : vector<8x128xf32> to vector<128xf32>
    %7 = vector.shape_cast %6 : vector<128xf32> to vector<1x128xf32>
    %cst_5 = arith.constant 1.250000e-01 : f32
    %8 = vector.broadcast %cst_5 : f32 to vector<1x128xf32>
    %9 = arith.mulf %4, %8 : vector<1x128xf32>
    %cst_6 = arith.constant 1.250000e-01 : f32
    %10 = vector.broadcast %cst_6 : f32 to vector<1x128xf32>
    %11 = arith.mulf %7, %10 : vector<1x128xf32>
    %12 = arith.mulf %9, %9 : vector<1x128xf32>
    %13 = arith.subf %11, %12 : vector<1x128xf32>
    %cst_7 = arith.constant 0.000000e+00 : f32
    %14 = vector.broadcast %cst_7 : f32 to vector<1x128xf32>
    %15 = arith.maximumf %13, %14 : vector<1x128xf32>
    %c0_8 = arith.constant 0 : index
    %c0_9 = arith.constant 0 : index
    %16 = vector.load %arg3[%c0_8, %c0_9] : memref<2x128xf32, #tpu.memory_space<vmem>>, vector<1x128xf32>
    %c1 = arith.constant 1 : index
    %c0_10 = arith.constant 0 : index
    %17 = vector.load %arg3[%c1, %c0_10] : memref<2x128xf32, #tpu.memory_space<vmem>>, vector<1x128xf32>
    %cst_11 = arith.constant 9.99999974E-6 : f32
    %18 = vector.broadcast %cst_11 : f32 to vector<1x128xf32>
    %19 = arith.addf %15, %18 : vector<1x128xf32>
    %20 = math.rsqrt %19 : vector<1x128xf32>
    %21 = arith.mulf %16, %20 : vector<1x128xf32>
    %22 = arith.mulf %9, %21 : vector<1x128xf32>
    %23 = arith.subf %17, %22 : vector<1x128xf32>
    %24 = vector.broadcast %21 : vector<1x128xf32> to vector<8x128xf32>
    %25 = arith.mulf %2, %24 : vector<8x128xf32>
    %26 = vector.broadcast %23 : vector<1x128xf32> to vector<8x128xf32>
    %27 = arith.addf %25, %26 : vector<8x128xf32>
    %cst_12 = arith.constant 2.000000e-01 : f32
    %28 = vector.broadcast %cst_12 : f32 to vector<8x128xf32>
    %29 = arith.mulf %28, %27 : vector<8x128xf32>
    %30 = arith.maximumf %27, %29 : vector<8x128xf32>
    %c0_13 = arith.constant 0 : index
    %c0_14 = arith.constant 0 : index
    %31 = vector.load %arg4[%c0_13, %c0_14] : memref<8x128xf32, #tpu.memory_space<vmem>>, vector<8x128xf32>
    tpu.vector_store %arg4[%c0_13, %c0_14], %30 {strides = array<i32>} : memref<8x128xf32, #tpu.memory_space<vmem>>, vector<8x128xf32>,
    return
  }
  func.func @transform_0(%arg0: i32) -> (i32, i32) {
    %c0_i32 = arith.constant 0 : i32
    %c0_i32_0 = arith.constant 0 : i32
    %c0_i32_1 = arith.constant 0 : i32
    return %c0_i32, %c0_i32_0 : i32, i32
  }
  func.func @transform_1(%arg0: i32) -> (i32, i32) {
    %c0_i32 = arith.constant 0 : i32
    %c0_i32_0 = arith.constant 0 : i32
    return %c0_i32, %arg0 : i32, i32
  }
  func.func @transform_2(%arg0: i32) -> (i32, i32) {
    %c0_i32 = arith.constant 0 : i32
    %c0_i32_0 = arith.constant 0 : i32
    return %c0_i32, %arg0 : i32, i32
  }
  func.func @transform_3(%arg0: i32) -> (i32, i32) {
    %c0_i32 = arith.constant 0 : i32
    %c0_i32_0 = arith.constant 0 : i32
    return %c0_i32, %arg0 : i32, i32
  }
}

</mosaic_0001>

<llo_original>
// kernel: tpu_custom_call.1
$region0: #{tpu_custom_call.1}
  #allocation0 [shape = 'u32[]', space=smem, size = 0x4, offset = 0x4, fixed_abs, tag = 'smem constant byte address 0x4 - core index']
  #allocation1 [shape = 'u32[144,128]{1,0:T(1,128)}', space=vmem, size = 0x12000, scoped, tag = 'internal scratch']
  %s0 = inlined_call_operand.hbm [shape: bf16[8,32], index: 0, kind: input, shape index: {}]
  %s1 = inlined_call_operand.hbm [shape: bf16[32,128], index: 1, kind: input, shape index: {}]
  %s2 = inlined_call_operand.vmem [shape: f32[2,128], index: 2, kind: input, shape index: {}]
  %s3 = inlined_call_operand.hbm [shape: f32[8,16], index: 3, kind: output, shape index: {}]
  %s4 = sld [smem:[#allocation0]]
  $region30: #{tpu_custom_call.1} parent=0
    _
  %s6 = ssub.s32 1, %s4
  %s7 = scalar_select 0, %s6, %s4
  $region1: #{tpu_custom_call.1} parent=0
    #allocation2 [shape = 'u8[2048]{0}', space=vmem, size = 0x800, scoped, tag = 'input window, operand 0, single buffered']
    #allocation3 [shape = 's32[1]{0}', space=sflag, size = 0x4, scoped, tag = 'scoped memory for tpu_custom_call.1']
    #allocation4 [shape = 's32[1]{0}', space=sflag, size = 0x4, scoped, tag = 'scoped memory for tpu_custom_call.1']
    #allocation5 [shape = 'u8[8192]{0}', space=vmem, size = 0x2000, scoped, tag = 'input window, operand 1, single buffered']
    #allocation6 [shape = 's32[1]{0}', space=sflag, size = 0x4, scoped, tag = 'scoped memory for tpu_custom_call.1']
    #allocation7 [shape = 'u8[4096]{0}', space=vmem, size = 0x1000, scoped, tag = 'output window, operand 0, single buffered']
    %8 = vsyncpa [#allocation3], 0
    %9 = vsyncpa [#allocation6], 0
    %10 = vsyncpa [#allocation4], 0
    // Predicated region
    $region2: #{tpu_custom_call.1} parent=1 // pred_check
      _
    $region3: #{tpu_custom_call.1} parent=1 // pred_check_branch
      %12 = sbr.rel (0) target = $region5
    $region4: #{tpu_custom_call.1} parent=1 // pred_region
      %s14 = ssub.s32 64, 64
      %15 = vsyncadd [#allocation3], %s14
      %s17 = sshll.u32 [#allocation2], 4
      %s18 = int_to_ptr.vmem [resolvable:$true] %s17
      %20 = dma.hbm_to_vmem [thread:$0]  %s0, 64, %s18, [#allocation3]
    $region5: #{tpu_custom_call.1} parent=1 // pred_fallthru
      _
    // Predicated region
    $region6: #{tpu_custom_call.1} parent=1 // pred_check
      _
    $region7: #{tpu_custom_call.1} parent=1 // pred_check_branch
      %22 = sbr.rel (0) target = $region9
    $region8: #{tpu_custom_call.1} parent=1 // pred_region
      %s24 = ssub.s32 256, 256
      %25 = vsyncadd [#allocation6], %s24
      %s26 = sshll.u32 [#allocation5], 4
      %s27 = int_to_ptr.vmem [resolvable:$true] %s26
      %32 = dma.hbm_to_vmem [thread:$0]  %s1, 256, %s27, [#allocation6], 64, 64, 4
    $region9: #{tpu_custom_call.1} parent=1 // pred_fallthru
      _
    // Predicated region
    $region10: #{tpu_custom_call.1} parent=1 // pred_check
      _
    $region11: #{tpu_custom_call.1} parent=1 // pred_check_branch
      %34 = sbr.rel (0) target = $region13
    $region12: #{tpu_custom_call.1} parent=1 // pred_region
      _
    $region13: #{tpu_custom_call.1} parent=1 // pred_fallthru
      _
    // Predicated region
    $region14: #{tpu_custom_call.1} parent=1 // pred_check
      _
    $region15: #{tpu_custom_call.1} parent=1 // pred_check_branch
      %36 = sbr.rel (0) target = $region17
    $region16: #{tpu_custom_call.1} parent=1 // pred_region
      %37 = dma.done [#allocation3], 64
    $region17: #{tpu_custom_call.1} parent=1 // pred_fallthru
      _
    // Predicated region
    $region18: #{tpu_custom_call.1} parent=1 // pred_check
      _
    $region19: #{tpu_custom_call.1} parent=1 // pred_check_branch
      %39 = sbr.rel (0) target = $region21
    $region20: #{tpu_custom_call.1} parent=1 // pred_region
      %40 = dma.done [#allocation6], 256
    $region21: #{tpu_custom_call.1} parent=1 // pred_fallthru
      _
    %v42 = vld [vmem:[#allocation2] sm:$0xf]
    %v43 = vld [vmem:[#allocation5] sm:$0xf]
    %v44 = vld [vmem:[#allocation5 + $0x4] sm:$0xf]
    %v45 = vld [vmem:[#allocation5 + $0x8] sm:$0xf]
    %v46 = vld [vmem:[#allocation5 + $0xc] sm:$0xf]
    %v51 = vunpack.c.l.b16 %v43
    %v52 = vunpack.c.l.b16 %v44
    %v53 = vunpack.c.l.b16 %v45
    %v54 = vunpack.c.l.b16 %v46
    %v55 = vpack.c.b16 %v52, %v51
    %v56 = vpack.c.b16 %v54, %v53
    %vm59 = vcmask 261120
    %v61 = vsel %vm59, %v42, 0
    %63 = vmatprep.subr.bf16.mxu0 0
    %64 = vmatpush1.bf16.msra.mxu0 %v55
    %65 = vmatprep.subr.bf16.mxu0 0
    %66 = vmatpush1.bf16.msra.mxu0 %v56
    %67 = vmatprep.subr.bf16.mxu0 0
    %68 = vmatpush1.bf16.msra.mxu0 0
    %69 = vmatprep.subr.bf16.mxu0 0
    %70 = vmatpush1.bf16.msra.mxu0 0
    %71 = vmatprep.subr.bf16.mxu0 0
    %72 = vmatpush1.bf16.msra.mxu0 0
    %73 = vmatprep.subr.bf16.mxu0 0
    %74 = vmatpush1.bf16.msra.mxu0 0
    %75 = vmatprep.subr.bf16.mxu0 0
    %76 = vmatpush1.bf16.msra.mxu0 0
    %77 = vmatprep.subr.bf16.mxu0 0
    %78 = vmatpush1.bf16.msra.mxu0 0
    %79 = vmatprep.subr.bf16.mxu0 0
    %80 = vmatpush1.bf16.msra.mxu0 0
    %81 = vmatprep.subr.bf16.mxu0 0
    %82 = vmatpush1.bf16.msra.mxu0 0
    %83 = vmatprep.subr.bf16.mxu0 0
    %84 = vmatpush1.bf16.msra.mxu0 0
    %85 = vmatprep.subr.bf16.mxu0 0
    %86 = vmatpush1.bf16.msra.mxu0 0
    %87 = vmatprep.subr.bf16.mxu0 0
    %88 = vmatpush1.bf16.msra.mxu0 0
    %89 = vmatprep.subr.bf16.mxu0 0
    %90 = vmatpush1.bf16.msra.mxu0 0
    %91 = vmatprep.subr.bf16.mxu0 0
    %92 = vmatpush1.bf16.msra.mxu0 0
    %93 = vmatprep.subr.bf16.mxu0 0
    %94 = vmatpush1.bf16.msra.mxu0 0
    %95 = vmatprep.mubr.bf16.mxu0 0
    %96 = vmatmul.mubr.bf16.gmra.mrb[0].mxu0 %v61
    %v97 = vpop.f32.mrb[0].mxu0
    %v98 = vadd.f32 0.0, %v97
    %v99 = vpop.f32.mrb[0].mxu0
    %v100 = vpop.f32.mrb[0].mxu0
    %v101 = vpop.f32.mrb[0].mxu0
    %102 = vdwg.mxu0
    %v103 = vrot.slane %v98, 4
    %v104 = vadd.f32 %v98, %v103
    %v105 = vrot.slane %v104, 2
    %v106 = vadd.f32 %v104, %v105
    %v107 = vrot.slane %v106, 1
    %v108 = vadd.f32 %v106, %v107
    %v109 = vmul.f32 %v98, %v98
    %v110 = vrot.slane %v109, 4
    %v111 = vadd.f32 %v109, %v110
    %v112 = vrot.slane %v111, 2
    %v113 = vadd.f32 %v111, %v112
    %v114 = vrot.slane %v113, 1
    %v115 = vadd.f32 %v113, %v114
    %v116 = vmul.f32 %v108, 0.125
    %v117 = vmul.f32 %v115, 0.125
    %v118 = vmul.f32 %v116, %v116
    %v119 = vsub.f32 %v117, %v118
    %v120 = vmax.f32 %v119, 0.0
    %v121 = vld [vmem:[%s2] sm:$0x1]
    %v122 = vld [vmem:[%s2 + $0x1] sm:$0x1]
    %v123 = vadd.f32 %v120, 1e-05
    %v124 = vrsqrt.pop %v123
    %v125 = vmul.f32 %v121, %v124
    %v126 = vmul.f32 %v116, %v125
    %v127 = vsub.f32 %v122, %v126
    %v128 = vlaneseq
    %v129 = vshrl.u32 %v128, 7
    %v130 = vsub.s32 0, %v129
    %v131 = vrot.slane %v125, %v130
    %v132 = vmul.f32 %v98, %v131
    %v133 = vlaneseq
    %v134 = vshrl.u32 %v133, 7
    %v135 = vsub.s32 0, %v134
    %v136 = vrot.slane %v127, %v135
    %v137 = vadd.f32 %v132, %v136
    %v138 = vmul.f32 %v137, 0.2
    %v139 = vmax.f32 %v137, %v138
    %140 = vst [vmem:[#allocation7] sm:$0xff] %v139
    // Predicated region
    $region22: #{tpu_custom_call.1} parent=1 // pred_check
      _
    $region23: #{tpu_custom_call.1} parent=1 // pred_check_branch
      %142 = sbr.rel (0) target = $region25
    $region24: #{tpu_custom_call.1} parent=1 // pred_region
      %s144 = ssub.s32 128, 128
      %145 = vsyncadd [#allocation4], %s144
      %s147 = sshll.u32 [#allocation7], 4
      %s148 = int_to_ptr.vmem [resolvable:$true] %s147
      %150 = dma.vmem_to_hbm [thread:$0]  %s148, 128, %s3, [#allocation4]
    $region25: #{tpu_custom_call.1} parent=1 // pred_fallthru
      _
    // Predicated region
    $region26: #{tpu_custom_call.1} parent=1 // pred_check
      _
    $region27: #{tpu_custom_call.1} parent=1 // pred_check_branch
      %152 = sbr.rel (0) target = $region29
    $region28: #{tpu_custom_call.1} parent=1 // pred_region
      %153 = dma.done [#allocation4], 128
    $region29: #{tpu_custom_call.1} parent=1 // pred_fallthru
      _
    %154 = vsyncpa [#allocation3], 1
    %155 = vsyncpa [#allocation6], 1
    %156 = vsyncpa [#allocation4], 1

</llo_original>
